<compile_context>
chip_gen: v6e
topology: v6e:2x2x1
jax: 0.10.0
libtpu: 0.0.40
codegen_flags: <defaults>
</compile_context>

<pallas_src>
import dataclasses
import functools
import math

import jax
import jax.numpy as jnp
from jax.experimental import pallas as pl
from jax.experimental.pallas import tpu as pltpu


# ----------------------------------------------------------------------------- config


@dataclasses.dataclass(frozen=True)
class IPAConfig:
    c_s: int
    c_z: int
    c_hidden: int
    no_heads: int
    no_qk_points: int
    no_v_points: int
    dropout: float = 0.0


def _largest_tile(n, cap):
    """Largest multiple-of-8 divisor of n that is <= cap (or n itself if n <= cap)."""
    if n <= cap:
        return n
    t = (cap // 8) * 8
    while t >= 8:
        if n % t == 0:
            return t
        t -= 8
    return n


def _dot(a, b):
    return jnp.dot(a, b, preferred_element_type=jnp.float32)


def _dot_nt(a, b):
    """a @ b.T without materializing a transpose (contract last dims of both)."""
    return jax.lax.dot_general(
        a, b, (((1,), (1,)), ((), ())), preferred_element_type=jnp.float32)


# ----------------------------------------------------------------------------- kernels


def _proj_kernel(s_ref, rot_ref, trn_ref, wqkv_ref, bqkv_ref,
                 wpx_ref, wpy_ref, wpz_ref, bpx_ref, bpy_ref, bpz_ref,
                 qkv_ref, gx_ref, gy_ref, gz_ref):
    """Fused q/k/v + point projections and rigid apply for a tile of residues."""
    s = s_ref[...]

    qkv_ref[...] = _dot(s, wqkv_ref[...]) + bqkv_ref[...]

    px = _dot(s, wpx_ref[...]) + bpx_ref[...]
    py = _dot(s, wpy_ref[...]) + bpy_ref[...]
    pz = _dot(s, wpz_ref[...]) + bpz_ref[...]

    rot = rot_ref[...]                     # [tile, 9], row-major R[i, j] -> 3*i+j
    trn = trn_ref[...]                     # [tile, 3]
    r00, r01, r02 = rot[:, 0:1], rot[:, 1:2], rot[:, 2:3]
    r10, r11, r12 = rot[:, 3:4], rot[:, 4:5], rot[:, 5:6]
    r20, r21, r22 = rot[:, 6:7], rot[:, 7:8], rot[:, 8:9]
    tx, ty, tz = trn[:, 0:1], trn[:, 1:2], trn[:, 2:3]

    # global = R @ p + t
    gx_ref[...] = r00 * px + r01 * py + r02 * pz + tx
    gy_ref[...] = r10 * px + r11 * py + r12 * pz + ty
    gz_ref[...] = r20 * px + r21 * py + r22 * pz + tz


def _pair_kernel(z_ref, w_ref, b_ref, out_ref):
    """Packed (linear_b | down_z) projection on rows of the flattened pair rep."""
    out_ref[...] = _dot(z_ref[...], w_ref[...]) + b_ref[...]


def _ipa_attn_kernel(q_ref, k_ref, v_ref, qp_ref, kp_ref, vp_ref, b2_ref, pzt_ref,
                     mq_ref, mk_ref, rot_ref, trn_ref, hw_ref, wout_ref, bout_ref,
                     out_ref, *, H, C, Pq, Pv, Cz4, c_s, inf, eps):
    """Attention + output construction + linear_out for one (batch, query-tile)."""
    f32 = jnp.float32
    tq = q_ref.shape[2]

    scale_qk = math.sqrt(1.0 / (3.0 * C))
    scale_b = math.sqrt(1.0 / 3.0)
    pt_scale = math.sqrt(1.0 / (3.0 * (Pq * 9.0 / 2.0)))

    # softplus(head_weights) * point scale, [1, H]
    hw = jnp.log1p(jnp.exp(hw_ref[...])) * pt_scale

    # additive mask: inf * (m_i * m_j - 1)
    sq_mask = inf * (mq_ref[0] * mk_ref[0] - 1.0)           # [tq, N]

    # inverse-rigid components for the query rows
    rot = rot_ref[0]                                        # [tq, 9]
    trn = trn_ref[0]                                        # [tq, 3]
    r00, r01, r02 = rot[:, 0:1], rot[:, 1:2], rot[:, 2:3]
    r10, r11, r12 = rot[:, 3:4], rot[:, 4:5], rot[:, 5:6]
    r20, r21, r22 = rot[:, 6:7], rot[:, 7:8], rot[:, 8:9]
    tx, ty, tz = trn[:, 0:1], trn[:, 1:2], trn[:, 2:3]

    pzt = pzt_ref[0]                                        # [tq, Cz4, N]

    HC, HPv = H * C, H * Pv
    off_o, off_x = 0, HC
    off_y, off_z = HC + HPv, HC + 2 * HPv
    off_n, off_pr = HC + 3 * HPv, HC + 4 * HPv

    acc = jnp.zeros((tq, c_s), f32)
    ones_row = jnp.ones((1, 3 * Pq), f32)

    for h in range(H):
        q_h = q_ref[0, h]                                   # [tq, C]
        k_h = k_ref[0, h]                                   # [N,  C]
        v_h = v_ref[0, h]                                   # [N,  C]
        qp_h = qp_ref[0, h]                                 # [tq, 3*Pq]
        kp_h = kp_ref[0, h]                                 # [N,  3*Pq]
        vp_h = vp_ref[0, h]                                 # [N,  3*Pv]

        # scalar attention + pair bias
        logits = _dot_nt(q_h, k_h) * scale_qk               # [tq, N]
        logits = logits + scale_b * b2_ref[0, h]

        # point attention: sum_{p,c} (q - k)^2 = |q|^2 + |k|^2 - 2 q.k
        cross = _dot_nt(qp_h, kp_h)                         # [tq, N]
        qn = jnp.sum(qp_h * qp_h, axis=-1, keepdims=True)   # [tq, 1]
        kn = _dot_nt(ones_row, kp_h * kp_h)                 # [1, N]
        d2 = qn + kn - 2.0 * cross
        logits = logits - 0.5 * hw[:, h:h + 1] * d2
        logits = logits + sq_mask

        # softmax over keys
        m = jnp.max(logits, axis=-1, keepdims=True)
        e = jnp.exp(logits - m)
        a_h = e / jnp.sum(e, axis=-1, keepdims=True)        # [tq, N]

        # scalar value output -> its linear_out chunk
        o_h = _dot(a_h, v_h)                                # [tq, C]
        acc = acc + _dot(o_h, wout_ref[off_o + h * C: off_o + (h + 1) * C, :])

        # point output (global frame), back to local frame, norms
        op = _dot(a_h, vp_h)                                # [tq, 3*Pv] = [x | y | z]
        gx, gy, gz = op[:, 0:Pv], op[:, Pv:2 * Pv], op[:, 2 * Pv:3 * Pv]
        dx, dy, dz = gx - tx, gy - ty, gz - tz
        lx = r00 * dx + r10 * dy + r20 * dz                 # R^T (p - t)
        ly = r01 * dx + r11 * dy + r21 * dz
        lz = r02 * dx + r12 * dy + r22 * dz
        dist = jnp.sqrt(lx * lx + ly * ly + lz * lz + eps)

        acc = acc + _dot(lx, wout_ref[off_x + h * Pv: off_x + (h + 1) * Pv, :])
        acc = acc + _dot(ly, wout_ref[off_y + h * Pv: off_y + (h + 1) * Pv, :])
        acc = acc + _dot(lz, wout_ref[off_z + h * Pv: off_z + (h + 1) * Pv, :])
        acc = acc + _dot(dist, wout_ref[off_n + h * Pv: off_n + (h + 1) * Pv, :])

        # pair output: sum_j a[i, j] * pair_z[i, j, :]  (contraction along lanes)
        o_pr = jnp.sum(a_h[:, None, :] * pzt, axis=-1)      # [tq, Cz4]
        acc = acc + _dot(o_pr, wout_ref[off_pr + h * Cz4: off_pr + (h + 1) * Cz4, :])

    out_ref[0] = acc + bout_ref[...]


# ----------------------------------------------------------------------------- wrapper


def invariant_point_attention_pallas(s, z, rot, trans, mask, params, cfg,
                                     *, inf=1e5, eps=1e-8):
    """s:[B,N,c_s], z:[B,N,N,c_z], rot:[B,N,3,3], trans:[B,N,3], mask:[B,N]."""
    f32 = jnp.float32
    H, C = cfg.no_heads, cfg.c_hidden
    Pq, Pv = cfg.no_qk_points, cfg.no_v_points
    Pkv = Pq + Pv
    B, N, c_s = s.shape
    c_z = cfg.c_z
    Cz4 = c_z // 4
    HC, HPq, HPkv, HPv, HCz4 = H * C, H * Pq, H * Pkv, H * Pv, H * Cz4
    Din = HC + 4 * HPv + HCz4
    W_PTS = HPq + HPkv

    assert N % 8 == 0 and (B * N) % 8 == 0 and (B * N * N) % 8 == 0, \
        "demo wrapper requires residue counts to be multiples of 8"

    # ---------------- weight prep (pure layout plumbing, torch [out,in] -> [in,out]) --
    Wq_T = params["w_q"].T                                        # [c_s, HC]
    Wkv_T = params["w_kv"].T.reshape(c_s, H, 2 * C)
    Wk_T = Wkv_T[:, :, :C].reshape(c_s, HC)
    Wv_T = Wkv_T[:, :, C:].reshape(c_s, HC)
    bkv = params["b_kv"].reshape(H, 2 * C)
    bk, bv = bkv[:, :C].reshape(HC), bkv[:, C:].reshape(HC)
    W_qkv = jnp.concatenate([Wq_T, Wk_T, Wv_T], axis=1)           # [c_s, 3HC]
    b_qkv = jnp.concatenate([params["b_q"], bk, bv])[None, :]

    Wqp_T = params["w_qp"].T                                      # [c_s, 3*HPq]
    Wkp_T = params["w_kvp"].T                                     # [c_s, 3*HPkv]
    bqp, bkvp = params["b_qp"], params["b_kvp"]

    def _coord(c):
        w = jnp.concatenate([Wqp_T[:, c * HPq:(c + 1) * HPq],
                             Wkp_T[:, c * HPkv:(c + 1) * HPkv]], axis=1)
        b = jnp.concatenate([bqp[c * HPq:(c + 1) * HPq],
                             bkvp[c * HPkv:(c + 1) * HPkv]])[None, :]
        return w, b

    W_px, b_px = _coord(0)
    W_py, b_py = _coord(1)
    W_pz, b_pz = _coord(2)

    W_pair = jnp.concatenate([params["w_b"].T, params["w_dz"].T], axis=1)  # [c_z, H+Cz4]
    b_pair = jnp.concatenate([params["b_b"], params["b_dz"]])[None, :]

    W_out_T = params["w_out"].T                                   # [Din, c_s]
    b_out = params["b_out"][None, :]
    hw = params["head_weights"].reshape(1, H).astype(f32)

    # ---------------- kernel A: single-rep projections + rigid apply -------------------
    M = B * N
    tile_m = _largest_tile(M, 512)
    s2d = s.reshape(M, c_s).astype(f32)
    rot2d = rot.reshape(M, 9).astype(f32)
    trn2d = trans.reshape(M, 3).astype(f32)

    o_qkv, ptx, pty, ptz = pl.pallas_call(
        _proj_kernel,
        grid=(M // tile_m,),
        in_specs=[
            pl.BlockSpec((tile_m, c_s), lambda i: (i, 0)),
            pl.BlockSpec((tile_m, 9), lambda i: (i, 0)),
            pl.BlockSpec((tile_m, 3), lambda i: (i, 0)),
            pl.BlockSpec((c_s, 3 * HC), lambda i: (0, 0)),
            pl.BlockSpec((1, 3 * HC), lambda i: (0, 0)),
            pl.BlockSpec((c_s, W_PTS), lambda i: (0, 0)),
            pl.BlockSpec((c_s, W_PTS), lambda i: (0, 0)),
            pl.BlockSpec((c_s, W_PTS), lambda i: (0, 0)),
            pl.BlockSpec((1, W_PTS), lambda i: (0, 0)),
            pl.BlockSpec((1, W_PTS), lambda i: (0, 0)),
            pl.BlockSpec((1, W_PTS), lambda i: (0, 0)),
        ],
        out_specs=[
            pl.BlockSpec((tile_m, 3 * HC), lambda i: (i, 0)),
            pl.BlockSpec((tile_m, W_PTS), lambda i: (i, 0)),
            pl.BlockSpec((tile_m, W_PTS), lambda i: (i, 0)),
            pl.BlockSpec((tile_m, W_PTS), lambda i: (i, 0)),
        ],
        out_shape=(
            jax.ShapeDtypeStruct((M, 3 * HC), f32),
            jax.ShapeDtypeStruct((M, W_PTS), f32),
            jax.ShapeDtypeStruct((M, W_PTS), f32),
            jax.ShapeDtypeStruct((M, W_PTS), f32),
        ),
        compiler_params=pltpu.CompilerParams(dimension_semantics=("parallel",)),
    )(s2d, rot2d, trn2d, W_qkv, b_qkv, W_px, W_py, W_pz, b_px, b_py, b_pz)

    # ---------------- kernel B: pair projections (packed b | pair_z) -------------------
    Mz = B * N * N
    tile_z = _largest_tile(Mz, 1024)
    z2d = z.reshape(Mz, c_z).astype(f32)

    pair_out = pl.pallas_call(
        _pair_kernel,
        grid=(Mz // tile_z,),
        in_specs=[
            pl.BlockSpec((tile_z, c_z), lambda i: (i, 0)),
            pl.BlockSpec((c_z, H + Cz4), lambda i: (0, 0)),
            pl.BlockSpec((1, H + Cz4), lambda i: (0, 0)),
        ],
        out_specs=pl.BlockSpec((tile_z, H + Cz4), lambda i: (i, 0)),
        out_shape=jax.ShapeDtypeStruct((Mz, H + Cz4), f32),
        compiler_params=pltpu.CompilerParams(dimension_semantics=("parallel",)),
    )(z2d, W_pair, b_pair)

    # ---------------- layout plumbing (reshapes / transposes only) ---------------------
    qkv = o_qkv.reshape(B, N, 3, H, C)
    qkv = jnp.transpose(qkv, (2, 0, 3, 1, 4))                 # [3, B, H, N, C]
    q_a, k_a, v_a = qkv[0], qkv[1], qkv[2]

    def _split_pts(pt):
        qp = pt[:, :HPq].reshape(B, N, H, Pq)
        kvp = pt[:, HPq:].reshape(B, N, H, Pkv)
        return qp, kvp

    qpx, kvx = _split_pts(ptx)
    qpy, kvy = _split_pts(pty)
    qpz, kvz = _split_pts(ptz)
    qp_s = jnp.stack([qpx, qpy, qpz], axis=3)                 # [B, N, H, 3, Pq]
    kv_s = jnp.stack([kvx, kvy, kvz], axis=3)                 # [B, N, H, 3, Pkv]
    qp_a = jnp.transpose(qp_s, (0, 2, 1, 3, 4)).reshape(B, H, N, 3 * Pq)
    kp_a = jnp.transpose(kv_s[..., :Pq], (0, 2, 1, 3, 4)).reshape(B, H, N, 3 * Pq)
    vp_a = jnp.transpose(kv_s[..., Pq:], (0, 2, 1, 3, 4)).reshape(B, H, N, 3 * Pv)

    b_pair2 = jnp.transpose(pair_out[:, :H].reshape(B, N, N, H), (0, 3, 1, 2))   # [B,H,N,N]
    pair_z_t = jnp.transpose(pair_out[:, H:].reshape(B, N, N, Cz4), (0, 1, 3, 2))  # [B,N,Cz4,N]

    mask_f = mask.astype(f32)
    mq = mask_f.reshape(B, N, 1)
    mk = mask_f.reshape(B, 1, N)
    rot_q = rot.reshape(B, N, 9).astype(f32)
    trn_q = trans.reshape(B, N, 3).astype(f32)

    # ---------------- kernel C: attention + outputs + linear_out -----------------------
    tq = _largest_tile(N, 128)
    kern = functools.partial(_ipa_attn_kernel, H=H, C=C, Pq=Pq, Pv=Pv, Cz4=Cz4,
                             c_s=c_s, inf=float(inf), eps=float(eps))

    out = pl.pallas_call(
        kern,
        grid=(B, N // tq),
        in_specs=[
            pl.BlockSpec((1, H, tq, C), lambda b, i: (b, 0, i, 0)),       # q
            pl.BlockSpec((1, H, N, C), lambda b, i: (b, 0, 0, 0)),        # k
            pl.BlockSpec((1, H, N, C), lambda b, i: (b, 0, 0, 0)),        # v
            pl.BlockSpec((1, H, tq, 3 * Pq), lambda b, i: (b, 0, i, 0)),  # q_pts
            pl.BlockSpec((1, H, N, 3 * Pq), lambda b, i: (b, 0, 0, 0)),   # k_pts
            pl.BlockSpec((1, H, N, 3 * Pv), lambda b, i: (b, 0, 0, 0)),   # v_pts
            pl.BlockSpec((1, H, tq, N), lambda b, i: (b, 0, i, 0)),       # pair bias
            pl.BlockSpec((1, tq, Cz4, N), lambda b, i: (b, i, 0, 0)),     # pair_z (transposed)
            pl.BlockSpec((1, tq, 1), lambda b, i: (b, i, 0)),             # mask (query rows)
            pl.BlockSpec((1, 1, N), lambda b, i: (b, 0, 0)),              # mask (key rows)
            pl.BlockSpec((1, tq, 9), lambda b, i: (b, i, 0)),             # rotations (query rows)
            pl.BlockSpec((1, tq, 3), lambda b, i: (b, i, 0)),             # translations (query rows)
            pl.BlockSpec((1, H), lambda b, i: (0, 0)),                    # head_weights
            pl.BlockSpec((Din, c_s), lambda b, i: (0, 0)),                # W_out^T
            pl.BlockSpec((1, c_s), lambda b, i: (0, 0)),                  # b_out
        ],
        out_specs=pl.BlockSpec((1, tq, c_s), lambda b, i: (b, i, 0)),
        out_shape=jax.ShapeDtypeStruct((B, N, c_s), f32),
        compiler_params=pltpu.CompilerParams(
            dimension_semantics=("parallel", "parallel")),
    )(q_a, k_a, v_a, qp_a, kp_a, vp_a, b_pair2, pair_z_t, mq, mk, rot_q, trn_q,
      hw, W_out_T, b_out)

    return out


# ----------------------------------------------------------------------------- reference


def ipa_reference(s, z, rot, trans, mask, params, cfg, inf=1e5, eps=1e-8):
    """Pure-JAX mirror of the PyTorch forward (torch-layout params)."""
    H, C = cfg.no_heads, cfg.c_hidden
    Pq, Pv = cfg.no_qk_points, cfg.no_v_points
    B, N, _ = s.shape
    Cz4 = cfg.c_z // 4

    with jax.default_matmul_precision("float32"):
        lin = lambda x, w, b: jnp.matmul(x, w.T) + b

        q = lin(s, params["w_q"], params["b_q"]).reshape(B, N, H, C)
        kv = lin(s, params["w_kv"], params["b_kv"]).reshape(B, N, H, 2 * C)
        k, v = kv[..., :C], kv[..., C:]

        to_pts = lambda x: jnp.stack(jnp.split(x, 3, axis=-1), axis=-1)
        apply_r = lambda p: jnp.einsum("bnij,bnmj->bnmi", rot, p) + trans[:, :, None, :]

        q_pts = apply_r(to_pts(lin(s, params["w_qp"], params["b_qp"]))).reshape(B, N, H, Pq, 3)
        kv_pts = apply_r(to_pts(lin(s, params["w_kvp"], params["b_kvp"]))).reshape(
            B, N, H, Pq + Pv, 3)
        k_pts, v_pts = kv_pts[..., :Pq, :], kv_pts[..., Pq:, :]

        b_pair = lin(z, params["w_b"], params["b_b"])
        a = jnp.einsum("bihc,bjhc->bhij", q, k) * math.sqrt(1.0 / (3 * C))
        a = a + math.sqrt(1.0 / 3) * jnp.transpose(b_pair, (0, 3, 1, 2))

        disp = q_pts[:, :, None] - k_pts[:, None]
        pt_att = jnp.sum(disp ** 2, axis=-1)
        hw = jnp.log1p(jnp.exp(params["head_weights"])) * math.sqrt(1.0 / (3 * (Pq * 9.0 / 2)))
        pt_att = jnp.sum(pt_att * hw[None, None, None, :, None], axis=-1) * (-0.5)
        sq_mask = inf * (mask[:, :, None] * mask[:, None, :] - 1.0)
        a = a + jnp.transpose(pt_att, (0, 3, 1, 2)) + sq_mask[:, None, :, :]
        a = jax.nn.softmax(a, axis=-1)

        o = jnp.einsum("bhij,bjhc->bihc", a, v).reshape(B, N, H * C)
        o_pt = jnp.einsum("bhij,bjhpc->bihpc", a, v_pts)
        o_pt = jnp.einsum("bnji,bnhpj->bnhpi", rot, o_pt - trans[:, :, None, None, :])
        o_pt_norm = jnp.sqrt(jnp.sum(o_pt ** 2, axis=-1) + eps).reshape(B, N, H * Pv)
        o_pt_flat = o_pt.reshape(B, N, H * Pv, 3)

        pair_z = lin(z, params["w_dz"], params["b_dz"])
        o_pair = jnp.einsum("bhij,bijc->bihc", a, pair_z).reshape(B, N, H * Cz4)

        feats = jnp.concatenate(
            [o, o_pt_flat[..., 0], o_pt_flat[..., 1], o_pt_flat[..., 2], o_pt_norm, o_pair],
            axis=-1)
        return lin(feats, params["w_out"], params["b_out"])


# ----------------------------------------------------------------------------- test data


def make_params(key, cfg):
    """Deterministic synthetic parameters (torch layout: W [out, in], b [out]).

    NOTE: the real module zero-inits linear_out ('final' init), which would make the
    output trivially zero; small random values are used here so the math is exercised.
    """
    H, C = cfg.no_heads, cfg.c_hidden
    Pq, Pv = cfg.no_qk_points, cfg.no_v_points
    c_s, c_z = cfg.c_s, cfg.c_z
    Cz4 = c_z // 4
    Din = H * (C + 4 * Pv + Cz4)
    ks = jax.random.split(key, 14)

    def w(k, out_d, in_d):
        return jax.random.normal(k, (out_d, in_d), jnp.float32) / math.sqrt(in_d)

    def b(k, d):
        return jax.random.normal(k, (d,), jnp.float32) * 0.1

    return {
        "w_q": w(ks[0], H * C, c_s), "b_q": b(ks[1], H * C),
        "w_kv": w(ks[2], 2 * H * C, c_s), "b_kv": b(ks[3], 2 * H * C),
        "w_qp": w(ks[4], H * Pq * 3, c_s), "b_qp": b(ks[5], H * Pq * 3),
        "w_kvp": w(ks[6], H * (Pq + Pv) * 3, c_s), "b_kvp": b(ks[7], H * (Pq + Pv) * 3),
        "w_b": w(ks[8], H, c_z), "b_b": b(ks[9], H),
        "w_dz": w(ks[10], Cz4, c_z), "b_dz": b(ks[11], Cz4),
        "w_out": w(ks[12], c_s, Din), "b_out": b(ks[13], c_s),
        "head_weights": jnp.full((H,), 0.541324854612918, jnp.float32),  # ipa_point_weights_init_
    }


def _random_rotations(key, shape):
    qv = jax.random.normal(key, shape + (4,), jnp.float32)
    qv = qv / jnp.linalg.norm(qv, axis=-1, keepdims=True)
    w, x, y, z = qv[..., 0], qv[..., 1], qv[..., 2], qv[..., 3]
    return jnp.stack([
        jnp.stack([1 - 2 * (y * y + z * z), 2 * (x * y - w * z), 2 * (x * z + w * y)], -1),
        jnp.stack([2 * (x * y + w * z), 1 - 2 * (x * x + z * z), 2 * (y * z - w * x)], -1),
        jnp.stack([2 * (x * z - w * y), 2 * (y * z + w * x), 1 - 2 * (x * x + y * y)], -1),
    ], -2)


if __name__ == "__main__":
    cfg = IPAConfig(c_s=64, c_z=32, c_hidden=16, no_heads=4,
                    no_qk_points=4, no_v_points=8, dropout=0.0)
    B, N = 2, 16

    key = jax.random.PRNGKey(0)
    k_s, k_z, k_r, k_t, k_p = jax.random.split(key, 5)
    s = jax.random.normal(k_s, (B, N, cfg.c_s), jnp.float32)
    z = jax.random.normal(k_z, (B, N, N, cfg.c_z), jnp.float32) * 0.5
    rot = _random_rotations(k_r, (B, N))
    trans = jax.random.normal(k_t, (B, N, 3), jnp.float32)
    mask = (jnp.arange(N)[None, :] < (N - 3)).astype(jnp.float32) * jnp.ones((B, 1), jnp.float32)
    params = make_params(k_p, cfg)

    out = invariant_point_attention_pallas(s, z, rot, trans, mask, params, cfg)
    out = jax.block_until_ready(out)

    ref = ipa_reference(s, z, rot, trans, mask, params, cfg)
    assert out.shape == (B, N, cfg.c_s)
    assert bool(jnp.allclose(out, ref, atol=1e-3, rtol=1e-3)), \
        float(jnp.max(jnp.abs(out - ref)))

    print("KERNEL_OK")
</pallas_src>

<mosaic_0001>
module attributes {stable_mosaic.version = 11 : i64} {
  func.func @_proj_kernel(%arg0: i32, %arg1: memref<32x64xf32, #tpu.memory_space<vmem>>, %arg2: memref<32x9xf32, #tpu.memory_space<vmem>>, %arg3: memref<32x3xf32, #tpu.memory_space<vmem>>, %arg4: memref<64x192xf32, #tpu.memory_space<vmem>>, %arg5: memref<1x192xf32, #tpu.memory_space<vmem>>, %arg6: memref<64x64xf32, #tpu.memory_space<vmem>>, %arg7: memref<64x64xf32, #tpu.memory_space<vmem>>, %arg8: memref<64x64xf32, #tpu.memory_space<vmem>>, %arg9: memref<1x64xf32, #tpu.memory_space<vmem>>, %arg10: memref<1x64xf32, #tpu.memory_space<vmem>>, %arg11: memref<1x64xf32, #tpu.memory_space<vmem>>, %arg12: memref<32x192xf32, #tpu.memory_space<vmem>>, %arg13: memref<32x64xf32, #tpu.memory_space<vmem>>, %arg14: memref<32x64xf32, #tpu.memory_space<vmem>>, %arg15: memref<32x64xf32, #tpu.memory_space<vmem>>) attributes {dimension_semantics = [#tpu.dimension_semantics<parallel>], iteration_bounds = array<i64: 1>, scalar_prefetch = 0 : i64, scratch_operands = 0 : i64, tpu.core_type = #tpu.core_type<tc>, window_params = [{transform_indices = @transform_0, window_bounds = array<i64: 32, 64>}, {transform_indices = @transform_1, window_bounds = array<i64: 32, 9>}, {transform_indices = @transform_2, window_bounds = array<i64: 32, 3>}, {pipeline_mode = #tpu.pipeline_mode<synchronous>, transform_indices = @transform_3, window_bounds = array<i64: 64, 192>}, {pipeline_mode = #tpu.pipeline_mode<synchronous>, transform_indices = @transform_4, window_bounds = array<i64: 1, 192>}, {pipeline_mode = #tpu.pipeline_mode<synchronous>, transform_indices = @transform_5, window_bounds = array<i64: 64, 64>}, {pipeline_mode = #tpu.pipeline_mode<synchronous>, transform_indices = @transform_6, window_bounds = array<i64: 64, 64>}, {pipeline_mode = #tpu.pipeline_mode<synchronous>, transform_indices = @transform_7, window_bounds = array<i64: 64, 64>}, {pipeline_mode = #tpu.pipeline_mode<synchronous>, transform_indices = @transform_8, window_bounds = array<i64: 1, 64>}, {pipeline_mode = #tpu.pipeline_mode<synchronous>, transform_indices = @transform_9, window_bounds = array<i64: 1, 64>}, {pipeline_mode = #tpu.pipeline_mode<synchronous>, transform_indices = @transform_10, window_bounds = array<i64: 1, 64>}, {transform_indices = @transform_11, window_bounds = array<i64: 32, 192>}, {transform_indices = @transform_12, window_bounds = array<i64: 32, 64>}, {transform_indices = @transform_13, window_bounds = array<i64: 32, 64>}, {transform_indices = @transform_14, window_bounds = array<i64: 32, 64>}]} {
    %c0 = arith.constant 0 : index
    %c0_0 = arith.constant 0 : index
    %0 = vector.load %arg1[%c0, %c0_0] : memref<32x64xf32, #tpu.memory_space<vmem>>, vector<32x64xf32>
    %c0_1 = arith.constant 0 : index
    %c0_2 = arith.constant 0 : index
    %1 = vector.load %arg4[%c0_1, %c0_2] : memref<64x192xf32, #tpu.memory_space<vmem>>, vector<64x192xf32>
    %cst = arith.constant dense<0.000000e+00> : vector<32x192xf32>
    %2 = tpu.matmul %0, %1, %cst {dimension_numbers = #tpu.dot_dimension_numbers<[1], [0], [0], [1], [0, 0, 1, 1], [], []>} : vector<32x64xf32>, vector<64x192xf32>, vector<32x192xf32> -> vector<32x192xf32>
    %c0_3 = arith.constant 0 : index
    %c0_4 = arith.constant 0 : index
    %3 = vector.load %arg5[%c0_3, %c0_4] : memref<1x192xf32, #tpu.memory_space<vmem>>, vector<1x192xf32>
    %4 = vector.broadcast %3 : vector<1x192xf32> to vector<32x192xf32>
    %5 = arith.addf %2, %4 : vector<32x192xf32>
    %c0_5 = arith.constant 0 : index
    %c0_6 = arith.constant 0 : index
    %6 = vector.load %arg12[%c0_5, %c0_6] : memref<32x192xf32, #tpu.memory_space<vmem>>, vector<32x192xf32>
    tpu.vector_store %arg12[%c0_5, %c0_6], %5 {strides = array<i32>} : memref<32x192xf32, #tpu.memory_space<vmem>>, vector<32x192xf32>,
    %c0_7 = arith.constant 0 : index
    %c0_8 = arith.constant 0 : index
    %7 = vector.load %arg6[%c0_7, %c0_8] : memref<64x64xf32, #tpu.memory_space<vmem>>, vector<64x64xf32>
    %cst_9 = arith.constant dense<0.000000e+00> : vector<32x64xf32>
    %8 = tpu.matmul %0, %7, %cst_9 {dimension_numbers = #tpu.dot_dimension_numbers<[1], [0], [0], [1], [0, 0, 1, 1], [], []>} : vector<32x64xf32>, vector<64x64xf32>, vector<32x64xf32> -> vector<32x64xf32>
    %c0_10 = arith.constant 0 : index
    %c0_11 = arith.constant 0 : index
    %9 = vector.load %arg9[%c0_10, %c0_11] : memref<1x64xf32, #tpu.memory_space<vmem>>, vector<1x64xf32>
    %10 = vector.broadcast %9 : vector<1x64xf32> to vector<32x64xf32>
    %11 = arith.addf %8, %10 : vector<32x64xf32>
    %c0_12 = arith.constant 0 : index
    %c0_13 = arith.constant 0 : index
    %12 = vector.load %arg7[%c0_12, %c0_13] : memref<64x64xf32, #tpu.memory_space<vmem>>, vector<64x64xf32>
    %cst_14 = arith.constant dense<0.000000e+00> : vector<32x64xf32>
    %13 = tpu.matmul %0, %12, %cst_14 {dimension_numbers = #tpu.dot_dimension_numbers<[1], [0], [0], [1], [0, 0, 1, 1], [], []>} : vector<32x64xf32>, vector<64x64xf32>, vector<32x64xf32> -> vector<32x64xf32>
    %c0_15 = arith.constant 0 : index
    %c0_16 = arith.constant 0 : index
    %14 = vector.load %arg10[%c0_15, %c0_16] : memref<1x64xf32, #tpu.memory_space<vmem>>, vector<1x64xf32>
    %15 = vector.broadcast %14 : vector<1x64xf32> to vector<32x64xf32>
    %16 = arith.addf %13, %15 : vector<32x64xf32>
    %c0_17 = arith.constant 0 : index
    %c0_18 = arith.constant 0 : index
    %17 = vector.load %arg8[%c0_17, %c0_18] : memref<64x64xf32, #tpu.memory_space<vmem>>, vector<64x64xf32>
    %cst_19 = arith.constant dense<0.000000e+00> : vector<32x64xf32>
    %18 = tpu.matmul %0, %17, %cst_19 {dimension_numbers = #tpu.dot_dimension_numbers<[1], [0], [0], [1], [0, 0, 1, 1], [], []>} : vector<32x64xf32>, vector<64x64xf32>, vector<32x64xf32> -> vector<32x64xf32>
    %c0_20 = arith.constant 0 : index
    %c0_21 = arith.constant 0 : index
    %19 = vector.load %arg11[%c0_20, %c0_21] : memref<1x64xf32, #tpu.memory_space<vmem>>, vector<1x64xf32>
    %20 = vector.broadcast %19 : vector<1x64xf32> to vector<32x64xf32>
    %21 = arith.addf %18, %20 : vector<32x64xf32>
    %c0_22 = arith.constant 0 : index
    %c0_23 = arith.constant 0 : index
    %22 = vector.load %arg2[%c0_22, %c0_23] : memref<32x9xf32, #tpu.memory_space<vmem>>, vector<32x9xf32>
    %c0_24 = arith.constant 0 : index
    %c0_25 = arith.constant 0 : index
    %23 = vector.load %arg3[%c0_24, %c0_25] : memref<32x3xf32, #tpu.memory_space<vmem>>, vector<32x3xf32>
    %24 = vector.extract_strided_slice %22 {offsets = [0, 0], sizes = [32, 1], strides = [1, 1]} : vector<32x9xf32> to vector<32x1xf32>
    %25 = vector.extract_strided_slice %22 {offsets = [0, 1], sizes = [32, 1], strides = [1, 1]} : vector<32x9xf32> to vector<32x1xf32>
    %26 = vector.extract_strided_slice %22 {offsets = [0, 2], sizes = [32, 1], strides = [1, 1]} : vector<32x9xf32> to vector<32x1xf32>
    %27 = vector.extract_strided_slice %22 {offsets = [0, 3], sizes = [32, 1], strides = [1, 1]} : vector<32x9xf32> to vector<32x1xf32>
    %28 = vector.extract_strided_slice %22 {offsets = [0, 4], sizes = [32, 1], strides = [1, 1]} : vector<32x9xf32> to vector<32x1xf32>
    %29 = vector.extract_strided_slice %22 {offsets = [0, 5], sizes = [32, 1], strides = [1, 1]} : vector<32x9xf32> to vector<32x1xf32>
    %30 = vector.extract_strided_slice %22 {offsets = [0, 6], sizes = [32, 1], strides = [1, 1]} : vector<32x9xf32> to vector<32x1xf32>
    %31 = vector.extract_strided_slice %22 {offsets = [0, 7], sizes = [32, 1], strides = [1, 1]} : vector<32x9xf32> to vector<32x1xf32>
    %32 = vector.extract_strided_slice %22 {offsets = [0, 8], sizes = [32, 1], strides = [1, 1]} : vector<32x9xf32> to vector<32x1xf32>
    %33 = vector.extract_strided_slice %23 {offsets = [0, 0], sizes = [32, 1], strides = [1, 1]} : vector<32x3xf32> to vector<32x1xf32>
    %34 = vector.extract_strided_slice %23 {offsets = [0, 1], sizes = [32, 1], strides = [1, 1]} : vector<32x3xf32> to vector<32x1xf32>
    %35 = vector.extract_strided_slice %23 {offsets = [0, 2], sizes = [32, 1], strides = [1, 1]} : vector<32x3xf32> to vector<32x1xf32>
    %36 = vector.broadcast %24 : vector<32x1xf32> to vector<32x64xf32>
    %37 = arith.mulf %36, %11 : vector<32x64xf32>
    %38 = vector.broadcast %25 : vector<32x1xf32> to vector<32x64xf32>
    %39 = arith.mulf %38, %16 : vector<32x64xf32>
    %40 = arith.addf %37, %39 : vector<32x64xf32>
    %41 = vector.broadcast %26 : vector<32x1xf32> to vector<32x64xf32>
    %42 = arith.mulf %41, %21 : vector<32x64xf32>
    %43 = arith.addf %40, %42 : vector<32x64xf32>
    %44 = vector.broadcast %33 : vector<32x1xf32> to vector<32x64xf32>
    %45 = arith.addf %43, %44 : vector<32x64xf32>
    %c0_26 = arith.constant 0 : index
    %c0_27 = arith.constant 0 : index
    %46 = vector.load %arg13[%c0_26, %c0_27] : memref<32x64xf32, #tpu.memory_space<vmem>>, vector<32x64xf32>
    tpu.vector_store %arg13[%c0_26, %c0_27], %45 {strides = array<i32>} : memref<32x64xf32, #tpu.memory_space<vmem>>, vector<32x64xf32>,
    %47 = vector.broadcast %27 : vector<32x1xf32> to vector<32x64xf32>
    %48 = arith.mulf %47, %11 : vector<32x64xf32>
    %49 = vector.broadcast %28 : vector<32x1xf32> to vector<32x64xf32>
    %50 = arith.mulf %49, %16 : vector<32x64xf32>
    %51 = arith.addf %48, %50 : vector<32x64xf32>
    %52 = vector.broadcast %29 : vector<32x1xf32> to vector<32x64xf32>
    %53 = arith.mulf %52, %21 : vector<32x64xf32>
    %54 = arith.addf %51, %53 : vector<32x64xf32>
    %55 = vector.broadcast %34 : vector<32x1xf32> to vector<32x64xf32>
    %56 = arith.addf %54, %55 : vector<32x64xf32>
    %c0_28 = arith.constant 0 : index
    %c0_29 = arith.constant 0 : index
    %57 = vector.load %arg14[%c0_28, %c0_29] : memref<32x64xf32, #tpu.memory_space<vmem>>, vector<32x64xf32>
    tpu.vector_store %arg14[%c0_28, %c0_29], %56 {strides = array<i32>} : memref<32x64xf32, #tpu.memory_space<vmem>>, vector<32x64xf32>,
    %58 = vector.broadcast %30 : vector<32x1xf32> to vector<32x64xf32>
    %59 = arith.mulf %58, %11 : vector<32x64xf32>
    %60 = vector.broadcast %31 : vector<32x1xf32> to vector<32x64xf32>
    %61 = arith.mulf %60, %16 : vector<32x64xf32>
    %62 = arith.addf %59, %61 : vector<32x64xf32>
    %63 = vector.broadcast %32 : vector<32x1xf32> to vector<32x64xf32>
    %64 = arith.mulf %63, %21 : vector<32x64xf32>
    %65 = arith.addf %62, %64 : vector<32x64xf32>
    %66 = vector.broadcast %35 : vector<32x1xf32> to vector<32x64xf32>
    %67 = arith.addf %65, %66 : vector<32x64xf32>
    %c0_30 = arith.constant 0 : index
    %c0_31 = arith.constant 0 : index
    %68 = vector.load %arg15[%c0_30, %c0_31] : memref<32x64xf32, #tpu.memory_space<vmem>>, vector<32x64xf32>
    tpu.vector_store %arg15[%c0_30, %c0_31], %67 {strides = array<i32>} : memref<32x64xf32, #tpu.memory_space<vmem>>, vector<32x64xf32>,
    return
  }
  func.func @transform_0(%arg0: i32) -> (i32, i32) {
    %c0_i32 = arith.constant 0 : i32
    %c0_i32_0 = arith.constant 0 : i32
    return %arg0, %c0_i32 : i32, i32
  }
  func.func @transform_1(%arg0: i32) -> (i32, i32) {
    %c0_i32 = arith.constant 0 : i32
    %c0_i32_0 = arith.constant 0 : i32
    return %arg0, %c0_i32 : i32, i32
  }
  func.func @transform_2(%arg0: i32) -> (i32, i32) {
    %c0_i32 = arith.constant 0 : i32
    %c0_i32_0 = arith.constant 0 : i32
    return %arg0, %c0_i32 : i32, i32
  }
  func.func @transform_3(%arg0: i32) -> (i32, i32) {
    %c0_i32 = arith.constant 0 : i32
    %c0_i32_0 = arith.constant 0 : i32
    %c0_i32_1 = arith.constant 0 : i32
    return %c0_i32, %c0_i32_0 : i32, i32
  }
  func.func @transform_4(%arg0: i32) -> (i32, i32) {
    %c0_i32 = arith.constant 0 : i32
    %c0_i32_0 = arith.constant 0 : i32
    %c0_i32_1 = arith.constant 0 : i32
    return %c0_i32, %c0_i32_0 : i32, i32
  }
  func.func @transform_5(%arg0: i32) -> (i32, i32) {
    %c0_i32 = arith.constant 0 : i32
    %c0_i32_0 = arith.constant 0 : i32
    %c0_i32_1 = arith.constant 0 : i32
    return %c0_i32, %c0_i32_0 : i32, i32
  }
  func.func @transform_6(%arg0: i32) -> (i32, i32) {
    %c0_i32 = arith.constant 0 : i32
    %c0_i32_0 = arith.constant 0 : i32
    %c0_i32_1 = arith.constant 0 : i32
    return %c0_i32, %c0_i32_0 : i32, i32
  }
  func.func @transform_7(%arg0: i32) -> (i32, i32) {
    %c0_i32 = arith.constant 0 : i32
    %c0_i32_0 = arith.constant 0 : i32
    %c0_i32_1 = arith.constant 0 : i32
    return %c0_i32, %c0_i32_0 : i32, i32
  }
  func.func @transform_8(%arg0: i32) -> (i32, i32) {
    %c0_i32 = arith.constant 0 : i32
    %c0_i32_0 = arith.constant 0 : i32
    %c0_i32_1 = arith.constant 0 : i32
    return %c0_i32, %c0_i32_0 : i32, i32
  }
  func.func @transform_9(%arg0: i32) -> (i32, i32) {
    %c0_i32 = arith.constant 0 : i32
    %c0_i32_0 = arith.constant 0 : i32
    %c0_i32_1 = arith.constant 0 : i32
    return %c0_i32, %c0_i32_0 : i32, i32
  }
  func.func @transform_10(%arg0: i32) -> (i32, i32) {
    %c0_i32 = arith.constant 0 : i32
    %c0_i32_0 = arith.constant 0 : i32
    %c0_i32_1 = arith.constant 0 : i32
    return %c0_i32, %c0_i32_0 : i32, i32
  }
  func.func @transform_11(%arg0: i32) -> (i32, i32) {
    %c0_i32 = arith.constant 0 : i32
    %c0_i32_0 = arith.constant 0 : i32
    return %arg0, %c0_i32 : i32, i32
  }
  func.func @transform_12(%arg0: i32) -> (i32, i32) {
    %c0_i32 = arith.constant 0 : i32
    %c0_i32_0 = arith.constant 0 : i32
    return %arg0, %c0_i32 : i32, i32
  }
  func.func @transform_13(%arg0: i32) -> (i32, i32) {
    %c0_i32 = arith.constant 0 : i32
    %c0_i32_0 = arith.constant 0 : i32
    return %arg0, %c0_i32 : i32, i32
  }
  func.func @transform_14(%arg0: i32) -> (i32, i32) {
    %c0_i32 = arith.constant 0 : i32
    %c0_i32_0 = arith.constant 0 : i32
    return %arg0, %c0_i32 : i32, i32
  }
}

</mosaic_0001>

<llo_original>
// kernel: tpu_custom_call.1
$region0: #{tpu_custom_call.1}
  #allocation0 [shape = 'u32[]', space=smem, size = 0x4, offset = 0x4, fixed_abs, tag = 'smem constant byte address 0x4 - core index']
  #allocation1 [shape = 'u32[144,128]{1,0:T(1,128)}', space=vmem, size = 0x12000, scoped, tag = 'internal scratch']
  %s0 = inlined_call_operand.hbm [shape: f32[32,64], index: 0, kind: input, shape index: {}]
  %s1 = inlined_call_operand.vmem [shape: f32[32,9], index: 1, kind: input, shape index: {}]
  %s2 = inlined_call_operand.vmem [shape: f32[32,3], index: 2, kind: input, shape index: {}]
  %s3 = inlined_call_operand.hbm [shape: f32[64,192], index: 3, kind: input, shape index: {}]
  %s4 = inlined_call_operand.vmem [shape: f32[1,192], index: 4, kind: input, shape index: {}]
  %s5 = inlined_call_operand.vmem [shape: f32[64,64], index: 5, kind: input, shape index: {}]
  %s6 = inlined_call_operand.hbm [shape: f32[64,64], index: 6, kind: input, shape index: {}]
  %s7 = inlined_call_operand.hbm [shape: f32[64,64], index: 7, kind: input, shape index: {}]
  %s8 = inlined_call_operand.vmem [shape: f32[1,64], index: 8, kind: input, shape index: {}]
  %s9 = inlined_call_operand.vmem [shape: f32[1,64], index: 9, kind: input, shape index: {}]
  %s10 = inlined_call_operand.vmem [shape: f32[1,64], index: 10, kind: input, shape index: {}]
  %s11 = inlined_call_operand.hbm [shape: f32[32,192], index: 11, kind: output, shape index: {0}]
  %s12 = inlined_call_operand.hbm [shape: f32[32,64], index: 12, kind: output, shape index: {1}]
  %s13 = inlined_call_operand.hbm [shape: f32[32,64], index: 13, kind: output, shape index: {2}]
  %s14 = inlined_call_operand.hbm [shape: f32[32,64], index: 14, kind: output, shape index: {3}]
  %15 = xla_tuple %s11, %s12, %s13, %s14
  %s16 = sld [smem:[#allocation0]]
  $region94: #{tpu_custom_call.1} parent=0
    _
  %s18 = ssub.s32 1, %s16
  %s19 = scalar_select 0, %s18, %s16
  $region1: #{tpu_custom_call.1} parent=0
    #allocation2 [shape = 'u8[16384]{0}', space=vmem, size = 0x4000, scoped, tag = 'input window, operand 0, single buffered']
    #allocation3 [shape = 's32[1]{0}', space=sflag, size = 0x4, scoped, tag = 'scoped memory for tpu_custom_call.1']
    #allocation4 [shape = 's32[1]{0}', space=sflag, size = 0x4, scoped, tag = 'scoped memory for tpu_custom_call.1']
    #allocation5 [shape = 'u8[65536]{0}', space=vmem, size = 0x10000, scoped, tag = 'input window, operand 3, single buffered']
    #allocation6 [shape = 's32[1]{0}', space=sflag, size = 0x4, scoped, tag = 'scoped memory for tpu_custom_call.1']
    #allocation7 [shape = 'u8[32768]{0}', space=vmem, size = 0x8000, scoped, tag = 'input window, operand 6, single buffered']
    #allocation8 [shape = 'u8[32768]{0}', space=vmem, size = 0x8000, scoped, tag = 'input window, operand 7, single buffered']
    #allocation9 [shape = 's32[1]{0}', space=sflag, size = 0x4, scoped, tag = 'scoped memory for tpu_custom_call.1']
    #allocation10 [shape = 'u8[32768]{0}', space=vmem, size = 0x8000, scoped, tag = 'output window, operand 0, single buffered']
    #allocation11 [shape = 'u8[16384]{0}', space=vmem, size = 0x4000, scoped, tag = 'output window, operand 1, single buffered']
    #allocation12 [shape = 's32[1]{0}', space=sflag, size = 0x4, scoped, tag = 'scoped memory for tpu_custom_call.1']
    #allocation13 [shape = 'u8[16384]{0}', space=vmem, size = 0x4000, scoped, tag = 'output window, operand 2, single buffered']
    #allocation14 [shape = 'u8[16384]{0}', space=vmem, size = 0x4000, scoped, tag = 'output window, operand 3, single buffered']
    #allocation15 [shape = 's32[1]{0}', space=sflag, size = 0x4, scoped, tag = 'scoped memory for tpu_custom_call.1']
    %20 = vsyncpa [#allocation3], 0
    %21 = vsyncpa [#allocation6], 0
    %22 = vsyncpa [#allocation9], 0
    %23 = vsyncpa [#allocation4], 0
    %24 = vsyncpa [#allocation12], 0
    %25 = vsyncpa [#allocation15], 0
    // Predicated region
    $region2: #{tpu_custom_call.1} parent=1 // pred_check
      _
    $region3: #{tpu_custom_call.1} parent=1 // pred_check_branch
      %27 = sbr.rel (0) target = $region5
    $region4: #{tpu_custom_call.1} parent=1 // pred_region
      %s29 = ssub.s32 512, 512
      %30 = vsyncadd [#allocation3], %s29
      %s31 = sshll.u32 [#allocation2], 4
      %s32 = int_to_ptr.vmem [resolvable:$true] %s31
      %37 = dma.hbm_to_vmem [thread:$0]  %s0, 512, %s32, [#allocation3], 128, 128, 8
    $region5: #{tpu_custom_call.1} parent=1 // pred_fallthru
      _
    // Predicated region
    $region6: #{tpu_custom_call.1} parent=1 // pred_check
      _
    $region7: #{tpu_custom_call.1} parent=1 // pred_check_branch
      %39 = sbr.rel (0) target = $region9
    $region8: #{tpu_custom_call.1} parent=1 // pred_region
      _
    $region9: #{tpu_custom_call.1} parent=1 // pred_fallthru
      _
    // Predicated region
    $region10: #{tpu_custom_call.1} parent=1 // pred_check
      _
    $region11: #{tpu_custom_call.1} parent=1 // pred_check_branch
      %41 = sbr.rel (0) target = $region13
    $region12: #{tpu_custom_call.1} parent=1 // pred_region
      _
    $region13: #{tpu_custom_call.1} parent=1 // pred_fallthru
      _
    // Predicated region
    $region14: #{tpu_custom_call.1} parent=1 // pred_check
      _
    $region15: #{tpu_custom_call.1} parent=1 // pred_check_branch
      %43 = sbr.rel (0) target = $region17
    $region16: #{tpu_custom_call.1} parent=1 // pred_region
      %s45 = ssub.s32 2048, 2048
      %46 = vsyncadd [#allocation6], %s45
      %s47 = sshll.u32 [#allocation5], 4
      %s48 = int_to_ptr.vmem [resolvable:$true] %s47
      %53 = dma.hbm_to_vmem [thread:$0]  %s3, 2048, %s48, [#allocation6], 256, 256, 16
    $region17: #{tpu_custom_call.1} parent=1 // pred_fallthru
      _
    // Predicated region
    $region18: #{tpu_custom_call.1} parent=1 // pred_check
      _
    $region19: #{tpu_custom_call.1} parent=1 // pred_check_branch
      %55 = sbr.rel (0) target = $region21
    $region20: #{tpu_custom_call.1} parent=1 // pred_region
      _
    $region21: #{tpu_custom_call.1} parent=1 // pred_fallthru
      _
    // Predicated region
    $region22: #{tpu_custom_call.1} parent=1 // pred_check
      _
    $region23: #{tpu_custom_call.1} parent=1 // pred_check_branch
      %57 = sbr.rel (0) target = $region25
    $region24: #{tpu_custom_call.1} parent=1 // pred_region
      _
    $region25: #{tpu_custom_call.1} parent=1 // pred_fallthru
      _
    // Predicated region
    $region26: #{tpu_custom_call.1} parent=1 // pred_check
      _
    $region27: #{tpu_custom_call.1} parent=1 // pred_check_branch
      %59 = sbr.rel (0) target = $region29
    $region28: #{tpu_custom_call.1} parent=1 // pred_region
      %s61 = ssub.s32 1024, 1024
      %62 = vsyncadd [#allocation6], %s61
      %s63 = sshll.u32 [#allocation7], 4
      %s64 = int_to_ptr.vmem [resolvable:$true] %s63
      %69 = dma.hbm_to_vmem [thread:$0]  %s6, 1024, %s64, [#allocation6], 128, 128, 8
    $region29: #{tpu_custom_call.1} parent=1 // pred_fallthru
      _
    // Predicated region
    $region30: #{tpu_custom_call.1} parent=1 // pred_check
      _
    $region31: #{tpu_custom_call.1} parent=1 // pred_check_branch
      %71 = sbr.rel (0) target = $region33
    $region32: #{tpu_custom_call.1} parent=1 // pred_region
      %s73 = ssub.s32 1024, 1024
      %74 = vsyncadd [#allocation9], %s73
      %s75 = sshll.u32 [#allocation8], 4
      %s76 = int_to_ptr.vmem [resolvable:$true] %s75
      %81 = dma.hbm_to_vmem [thread:$0]  %s7, 1024, %s76, [#allocation9], 128, 128, 8
    $region33: #{tpu_custom_call.1} parent=1 // pred_fallthru
      _
    // Predicated region
    $region34: #{tpu_custom_call.1} parent=1 // pred_check
      _
    $region35: #{tpu_custom_call.1} parent=1 // pred_check_branch
      %83 = sbr.rel (0) target = $region37
    $region36: #{tpu_custom_call.1} parent=1 // pred_region
      _
    $region37: #{tpu_custom_call.1} parent=1 // pred_fallthru
      _
    // Predicated region
    $region38: #{tpu_custom_call.1} parent=1 // pred_check
      _
    $region39: #{tpu_custom_call.1} parent=1 // pred_check_branch
      %85 = sbr.rel (0) target = $region41
    $region40: #{tpu_custom_call.1} parent=1 // pred_region
      _
    $region41: #{tpu_custom_call.1} parent=1 // pred_fallthru
      _
    // Predicated region
    $region42: #{tpu_custom_call.1} parent=1 // pred_check
      _
    $region43: #{tpu_custom_call.1} parent=1 // pred_check_branch
      %87 = sbr.rel (0) target = $region45
    $region44: #{tpu_custom_call.1} parent=1 // pred_region
      _
    $region45: #{tpu_custom_call.1} parent=1 // pred_fallthru
      _
    // Predicated region
    $region46: #{tpu_custom_call.1} parent=1 // pred_check
      _
    $region47: #{tpu_custom_call.1} parent=1 // pred_check_branch
      %89 = sbr.rel (0) target = $region49
    $region48: #{tpu_custom_call.1} parent=1 // pred_region
      %90 = dma.done [#allocation3], 512
    $region49: #{tpu_custom_call.1} parent=1 // pred_fallthru
      _
    // Predicated region
    $region50: #{tpu_custom_call.1} parent=1 // pred_check
      _
    $region51: #{tpu_custom_call.1} parent=1 // pred_check_branch
      %92 = sbr.rel (0) target = $region53
    $region52: #{tpu_custom_call.1} parent=1 // pred_region
      %93 = dma.done [#allocation6], 2048
    $region53: #{tpu_custom_call.1} parent=1 // pred_fallthru
      _
    // Predicated region
    $region54: #{tpu_custom_call.1} parent=1 // pred_check
      _
    $region55: #{tpu_custom_call.1} parent=1 // pred_check_branch
      %95 = sbr.rel (0) target = $region57
    $region56: #{tpu_custom_call.1} parent=1 // pred_region
      %96 = dma.done [#allocation6], 1024
    $region57: #{tpu_custom_call.1} parent=1 // pred_fallthru
      _
    // Predicated region
    $region58: #{tpu_custom_call.1} parent=1 // pred_check
      _
    $region59: #{tpu_custom_call.1} parent=1 // pred_check_branch
      %98 = sbr.rel (0) target = $region61
    $region60: #{tpu_custom_call.1} parent=1 // pred_region
      %99 = dma.done [#allocation9], 1024
    $region61: #{tpu_custom_call.1} parent=1 // pred_fallthru
      _
    %v100 = vld [vmem:[#allocation2] sm:$0xff]
    %v101 = vld [vmem:[#allocation2 + $0x8] sm:$0xff]
    %v102 = vld [vmem:[#allocation2 + $0x10] sm:$0xff]
    %v103 = vld [vmem:[#allocation2 + $0x18] sm:$0xff]
    %v104 = vld [vmem:[#allocation5] sm:$0xff]
    %v105 = vld [vmem:[#allocation5 + $0x8] sm:$0xff]
    %v106 = vld [vmem:[#allocation5 + $0x10] sm:$0xff]
    %v107 = vld [vmem:[#allocation5 + $0x18] sm:$0xff]
    %v108 = vld [vmem:[#allocation5 + $0x20] sm:$0xff]
    %v109 = vld [vmem:[#allocation5 + $0x28] sm:$0xff]
    %v110 = vld [vmem:[#allocation5 + $0x30] sm:$0xff]
    %v111 = vld [vmem:[#allocation5 + $0x38] sm:$0xff]
    %v112 = vld [vmem:[#allocation5 + $0x40] sm:$0xff]
    %v113 = vld [vmem:[#allocation5 + $0x48] sm:$0xff]
    %v114 = vld [vmem:[#allocation5 + $0x50] sm:$0xff]
    %v115 = vld [vmem:[#allocation5 + $0x58] sm:$0xff]
    %v116 = vld [vmem:[#allocation5 + $0x60] sm:$0xff]
    %v117 = vld [vmem:[#allocation5 + $0x68] sm:$0xff]
    %v118 = vld [vmem:[#allocation5 + $0x70] sm:$0xff]
    %v119 = vld [vmem:[#allocation5 + $0x78] sm:$0xff]
    %v120 = vld [vmem:[%s4] sm:$0x3]
    %v122 = vlaneseq
    %v123 = vshrl.u32 %v122, 7
    %v124 = vsub.s32 0, %v123
    %v125 = vrot.slane %v120, %v124
    %v126 = vlaneseq
    %v127 = vshrl.u32 %v126, 7
    %v128 = vsub.s32 1, %v127
    %v129 = vrot.slane %v120, %v128
    %vm132 = vcmask 523264
    %v134 = vsel %vm132, %v100, 0
    %v137 = vsel %vm132, %v101, 0
    %v140 = vsel %vm132, %v102, 0
    %v143 = vsel %vm132, %v103, 0
    %145 = vmatprep.subr.mxu0 0.0
    %146 = vmatpush1.msra.mxu0 0.0
    %147 = vmatprep.subr.mxu0 0.0
    %148 = vmatpush1.msra.mxu0 0.0
    %149 = vmatprep.subr.mxu0 0.0
    %150 = vmatpush1.msra.mxu0 0.0
    %151 = vmatprep.subr.mxu0 0.0
    %152 = vmatpush1.msra.mxu0 0.0
    %153 = vmatprep.subr.mxu0 0.0
    %154 = vmatpush1.msra.mxu0 0.0
    %155 = vmatprep.subr.mxu0 0.0
    %156 = vmatpush1.msra.mxu0 0.0
    %157 = vmatprep.subr.mxu0 0.0
    %158 = vmatpush1.msra.mxu0 0.0
    %159 = vmatprep.subr.mxu0 0.0
    %160 = vmatpush1.msra.mxu0 0.0
    %161 = vmatprep.subr.mxu0 %v119
    %162 = vmatpush1.msra.mxu0 %v118
    %163 = vmatprep.subr.mxu0 %v117
    %164 = vmatpush1.msra.mxu0 %v116
    %165 = vmatprep.subr.mxu0 %v115
    %166 = vmatpush1.msra.mxu0 %v114
    %167 = vmatprep.subr.mxu0 %v113
    %168 = vmatpush1.msra.mxu0 %v112
    %169 = vmatprep.subr.mxu0 %v111
    %170 = vmatpush1.msra.mxu0 %v110
    %171 = vmatprep.subr.mxu0 %v109
    %172 = vmatpush1.msra.mxu0 %v108
    %173 = vmatprep.subr.mxu0 %v107
    %174 = vmatpush1.msra.mxu0 %v106
    %175 = vmatprep.subr.mxu0 %v105
    %176 = vmatpush1.msra.mxu0 %v104
    %177 = vmatprep.subr.mxu0 0.0
    %178 = vmatpush2.msra.mxu0 0.0
    %179 = vmatprep.subr.mxu0 0.0
    %180 = vmatpush2.msra.mxu0 0.0
    %181 = vmatprep.subr.mxu0 0.0
    %182 = vmatpush2.msra.mxu0 0.0
    %183 = vmatprep.subr.mxu0 0.0
    %184 = vmatpush2.msra.mxu0 0.0
    %185 = vmatprep.subr.mxu0 0.0
    %186 = vmatpush2.msra.mxu0 0.0
    %187 = vmatprep.subr.mxu0 0.0
    %188 = vmatpush2.msra.mxu0 0.0
    %189 = vmatprep.subr.mxu0 0.0
    %190 = vmatpush2.msra.mxu0 0.0
    %191 = vmatprep.subr.mxu0 0.0
    %192 = vmatpush2.msra.mxu0 0.0
    %193 = vmatprep.subr.mxu0 0.0
    %194 = vmatpush2.msra.mxu0 0.0
    %195 = vmatprep.subr.mxu0 0.0
    %196 = vmatpush2.msra.mxu0 0.0
    %197 = vmatprep.subr.mxu0 0.0
    %198 = vmatpush2.msra.mxu0 0.0
    %199 = vmatprep.subr.mxu0 0.0
    %200 = vmatpush2.msra.mxu0 0.0
    %201 = vmatprep.subr.mxu0 0.0
    %202 = vmatpush2.msra.mxu0 0.0
    %203 = vmatprep.subr.mxu0 0.0
    %204 = vmatpush2.msra.mxu0 0.0
    %205 = vmatprep.subr.mxu0 0.0
    %206 = vmatpush2.msra.mxu0 0.0
    %207 = vmatprep.subr.mxu0 0.0
    %208 = vmatpush2.msra.mxu0 0.0
    %209 = vmatprep.mubr.f32.mxu0 0.0
    %210 = vmatmul.mubr.f32.gmra.mxu0 %v134
    %v211 = vpop.f32.mrf.mxu0
    %v212 = vadd.f32 %v125, %v211
    %v213 = vpop.f32.mrf.mxu0
    %v214 = vadd.f32 %v129, %v213
    %215 = vmatprep.mubr.f32.mxu0 0.0
    %216 = vmatmul.mubr.f32.gmra.mxu0 %v137
    %v217 = vpop.f32.mrf.mxu0
    %v218 = vadd.f32 %v125, %v217
    %v219 = vpop.f32.mrf.mxu0
    %v220 = vadd.f32 %v129, %v219
    %221 = vmatprep.mubr.f32.mxu0 0.0
    %222 = vmatmul.mubr.f32.gmra.mxu0 %v140
    %v223 = vpop.f32.mrf.mxu0
    %v224 = vadd.f32 %v125, %v223
    %v225 = vpop.f32.mrf.mxu0
    %v226 = vadd.f32 %v129, %v225
    %227 = vmatprep.mubr.f32.mxu0 0.0
    %228 = vmatmul.mubr.f32.gmra.mxu0 %v143
    %v229 = vpop.f32.mrf.mxu0
    %v230 = vadd.f32 %v125, %v229
    %v231 = vpop.f32.mrf.mxu0
    %v232 = vadd.f32 %v129, %v231
    %233 = vdwg.mxu0
    %234 = vst [vmem:[#allocation10] sm:$0xff] %v212
    %235 = vst.msk [vmem:[#allocation10 + $0x8] sm:$0xff] %vm132, %v214
    %236 = vst [vmem:[#allocation10 + $0x10] sm:$0xff] %v218
    %237 = vst.msk [vmem:[#allocation10 + $0x18] sm:$0xff] %vm132, %v220
    %238 = vst [vmem:[#allocation10 + $0x20] sm:$0xff] %v224
    %239 = vst.msk [vmem:[#allocation10 + $0x28] sm:$0xff] %vm132, %v226
    %240 = vst [vmem:[#allocation10 + $0x30] sm:$0xff] %v230
    %241 = vst.msk [vmem:[#allocation10 + $0x38] sm:$0xff] %vm132, %v232
    %v242 = vld [vmem:[%s5] sm:$0xff]
    %v243 = vld [vmem:[%s5 + $0x8] sm:$0xff]
    %v244 = vld [vmem:[%s5 + $0x10] sm:$0xff]
    %v245 = vld [vmem:[%s5 + $0x18] sm:$0xff]
    %v246 = vld [vmem:[%s5 + $0x20] sm:$0xff]
    %v247 = vld [vmem:[%s5 + $0x28] sm:$0xff]
    %v248 = vld [vmem:[%s5 + $0x30] sm:$0xff]
    %v249 = vld [vmem:[%s5 + $0x38] sm:$0xff]
    %v250 = vld [vmem:[%s8] sm:$0x1]
    %v252 = vlaneseq
    %v253 = vshrl.u32 %v252, 7
    %v254 = vsub.s32 0, %v253
    %v255 = vrot.slane %v250, %v254
    %257 = vmatprep.subr.mxu0 0.0
    %258 = vmatpush1.msra.mxu0 0.0
    %259 = vmatprep.subr.mxu0 0.0
    %260 = vmatpush1.msra.mxu0 0.0
    %261 = vmatprep.subr.mxu0 0.0
    %262 = vmatpush1.msra.mxu0 0.0
    %263 = vmatprep.subr.mxu0 0.0
    %264 = vmatpush1.msra.mxu0 0.0
    %265 = vmatprep.subr.mxu0 0.0
    %266 = vmatpush1.msra.mxu0 0.0
    %267 = vmatprep.subr.mxu0 0.0
    %268 = vmatpush1.msra.mxu0 0.0
    %269 = vmatprep.subr.mxu0 0.0
    %270 = vmatpush1.msra.mxu0 0.0
    %271 = vmatprep.subr.mxu0 0.0
    %272 = vmatpush1.msra.mxu0 0.0
    %273 = vmatprep.subr.mxu0 0.0
    %274 = vmatpush1.msra.mxu0 %v249
    %275 = vmatprep.subr.mxu0 0.0
    %276 = vmatpush1.msra.mxu0 %v248
    %277 = vmatprep.subr.mxu0 0.0
    %278 = vmatpush1.msra.mxu0 %v247
    %279 = vmatprep.subr.mxu0 0.0
    %280 = vmatpush1.msra.mxu0 %v246
    %281 = vmatprep.subr.mxu0 0.0
    %282 = vmatpush1.msra.mxu0 %v245
    %283 = vmatprep.subr.mxu0 0.0
    %284 = vmatpush1.msra.mxu0 %v244
    %285 = vmatprep.subr.mxu0 0.0
    %286 = vmatpush1.msra.mxu0 %v243
    %287 = vmatprep.subr.mxu0 0.0
    %288 = vmatpush1.msra.mxu0 %v242
    %289 = vmatprep.subr.mxu0 0.0
    %290 = vmatpush2.msra.mxu0 0.0
    %291 = vmatprep.subr.mxu0 0.0
    %292 = vmatpush2.msra.mxu0 0.0
    %293 = vmatprep.subr.mxu0 0.0
    %294 = vmatpush2.msra.mxu0 0.0
    %295 = vmatprep.subr.mxu0 0.0
    %296 = vmatpush2.msra.mxu0 0.0
    %297 = vmatprep.subr.mxu0 0.0
    %298 = vmatpush2.msra.mxu0 0.0
    %299 = vmatprep.subr.mxu0 0.0
    %300 = vmatpush2.msra.mxu0 0.0
    %301 = vmatprep.subr.mxu0 0.0
    %302 = vmatpush2.msra.mxu0 0.0
    %303 = vmatprep.subr.mxu0 0.0
    %304 = vmatpush2.msra.mxu0 0.0
    %305 = vmatprep.subr.mxu0 0.0
    %306 = vmatpush2.msra.mxu0 0.0
    %307 = vmatprep.subr.mxu0 0.0
    %308 = vmatpush2.msra.mxu0 0.0
    %309 = vmatprep.subr.mxu0 0.0
    %310 = vmatpush2.msra.mxu0 0.0
    %311 = vmatprep.subr.mxu0 0.0
    %312 = vmatpush2.msra.mxu0 0.0
    %313 = vmatprep.subr.mxu0 0.0
    %314 = vmatpush2.msra.mxu0 0.0
    %315 = vmatprep.subr.mxu0 0.0
    %316 = vmatpush2.msra.mxu0 0.0
    %317 = vmatprep.subr.mxu0 0.0
    %318 = vmatpush2.msra.mxu0 0.0
    %319 = vmatprep.subr.mxu0 0.0
    %320 = vmatpush2.msra.mxu0 0.0
    %321 = vmatprep.mubr.f32.mxu0 0.0
    %322 = vmatmul.mubr.f32.gmra.mxu0 %v134
    %v323 = vpop.f32.mrf.mxu0
    %v324 = vadd.f32 %v255, %v323
    %v325 = vpop.f32.mrf.mxu0
    %326 = vmatprep.mubr.f32.mxu0 0.0
    %327 = vmatmul.mubr.f32.gmra.mxu0 %v137
    %v328 = vpop.f32.mrf.mxu0
    %v329 = vadd.f32 %v255, %v328
    %v330 = vpop.f32.mrf.mxu0
    %331 = vmatprep.mubr.f32.mxu0 0.0
    %332 = vmatmul.mubr.f32.gmra.mxu0 %v140
    %v333 = vpop.f32.mrf.mxu0
    %v334 = vadd.f32 %v255, %v333
    %v335 = vpop.f32.mrf.mxu0
    %336 = vmatprep.mubr.f32.mxu0 0.0
    %337 = vmatmul.mubr.f32.gmra.mxu0 %v143
    %v338 = vpop.f32.mrf.mxu0
    %v339 = vadd.f32 %v255, %v338
    %v340 = vpop.f32.mrf.mxu0
    %341 = vdwg.mxu0
    %v342 = vld [vmem:[#allocation7] sm:$0xff]
    %v343 = vld [vmem:[#allocation7 + $0x8] sm:$0xff]
    %v344 = vld [vmem:[#allocation7 + $0x10] sm:$0xff]
    %v345 = vld [vmem:[#allocation7 + $0x18] sm:$0xff]
    %v346 = vld [vmem:[#allocation7 + $0x20] sm:$0xff]
    %v347 = vld [vmem:[#allocation7 + $0x28] sm:$0xff]
    %v348 = vld [vmem:[#allocation7 + $0x30] sm:$0xff]
    %v349 = vld [vmem:[#allocation7 + $0x38] sm:$0xff]
    %v350 = vld [vmem:[%s9] sm:$0x1]
    %v352 = vlaneseq
    %v353 = vshrl.u32 %v352, 7
    %v354 = vsub.s32 0, %v353
    %v355 = vrot.slane %v350, %v354
    %357 = vmatprep.subr.mxu0 0.0
    %358 = vmatpush1.msra.mxu0 0.0
    %359 = vmatprep.subr.mxu0 0.0
    %360 = vmatpush1.msra.mxu0 0.0
    %361 = vmatprep.subr.mxu0 0.0
    %362 = vmatpush1.msra.mxu0 0.0
    %363 = vmatprep.subr.mxu0 0.0
    %364 = vmatpush1.msra.mxu0 0.0
    %365 = vmatprep.subr.mxu0 0.0
    %366 = vmatpush1.msra.mxu0 0.0
    %367 = vmatprep.subr.mxu0 0.0
    %368 = vmatpush1.msra.mxu0 0.0
    %369 = vmatprep.subr.mxu0 0.0
    %370 = vmatpush1.msra.mxu0 0.0
    %371 = vmatprep.subr.mxu0 0.0
    %372 = vmatpush1.msra.mxu0 0.0
    %373 = vmatprep.subr.mxu0 0.0
    %374 = vmatpush1.msra.mxu0 %v349
    %375 = vmatprep.subr.mxu0 0.0
    %376 = vmatpush1.msra.mxu0 %v348
    %377 = vmatprep.subr.mxu0 0.0
    %378 = vmatpush1.msra.mxu0 %v347
    %379 = vmatprep.subr.mxu0 0.0
    %380 = vmatpush1.msra.mxu0 %v346
    %381 = vmatprep.subr.mxu0 0.0
    %382 = vmatpush1.msra.mxu0 %v345
    %383 = vmatprep.subr.mxu0 0.0
    %384 = vmatpush1.msra.mxu0 %v344
    %385 = vmatprep.subr.mxu0 0.0
    %386 = vmatpush1.msra.mxu0 %v343
    %387 = vmatprep.subr.mxu0 0.0
    %388 = vmatpush1.msra.mxu0 %v342
    %389 = vmatprep.subr.mxu0 0.0
    %390 = vmatpush2.msra.mxu0 0.0
    %391 = vmatprep.subr.mxu0 0.0
    %392 = vmatpush2.msra.mxu0 0.0
    %393 = vmatprep.subr.mxu0 0.0
    %394 = vmatpush2.msra.mxu0 0.0
    %395 = vmatprep.subr.mxu0 0.0
    %396 = vmatpush2.msra.mxu0 0.0
    %397 = vmatprep.subr.mxu0 0.0
    %398 = vmatpush2.msra.mxu0 0.0
    %399 = vmatprep.subr.mxu0 0.0
    %400 = vmatpush2.msra.mxu0 0.0
    %401 = vmatprep.subr.mxu0 0.0
    %402 = vmatpush2.msra.mxu0 0.0
    %403 = vmatprep.subr.mxu0 0.0
    %404 = vmatpush2.msra.mxu0 0.0
    %405 = vmatprep.subr.mxu0 0.0
    %406 = vmatpush2.msra.mxu0 0.0
    %407 = vmatprep.subr.mxu0 0.0
    %408 = vmatpush2.msra.mxu0 0.0
    %409 = vmatprep.subr.mxu0 0.0
    %410 = vmatpush2.msra.mxu0 0.0
    %411 = vmatprep.subr.mxu0 0.0
    %412 = vmatpush2.msra.mxu0 0.0
    %413 = vmatprep.subr.mxu0 0.0
    %414 = vmatpush2.msra.mxu0 0.0
    %415 = vmatprep.subr.mxu0 0.0
    %416 = vmatpush2.msra.mxu0 0.0
    %417 = vmatprep.subr.mxu0 0.0
    %418 = vmatpush2.msra.mxu0 0.0
    %419 = vmatprep.subr.mxu0 0.0
    %420 = vmatpush2.msra.mxu0 0.0
    %421 = vmatprep.mubr.f32.mxu0 0.0
    %422 = vmatmul.mubr.f32.gmra.mxu0 %v134
    %v423 = vpop.f32.mrf.mxu0
    %v424 = vadd.f32 %v355, %v423
    %v425 = vpop.f32.mrf.mxu0
    %426 = vmatprep.mubr.f32.mxu0 0.0
    %427 = vmatmul.mubr.f32.gmra.mxu0 %v137
    %v428 = vpop.f32.mrf.mxu0
    %v429 = vadd.f32 %v355, %v428
    %v430 = vpop.f32.mrf.mxu0
    %431 = vmatprep.mubr.f32.mxu0 0.0
    %432 = vmatmul.mubr.f32.gmra.mxu0 %v140
    %v433 = vpop.f32.mrf.mxu0
    %v434 = vadd.f32 %v355, %v433
    %v435 = vpop.f32.mrf.mxu0
    %436 = vmatprep.mubr.f32.mxu0 0.0
    %437 = vmatmul.mubr.f32.gmra.mxu0 %v143
    %v438 = vpop.f32.mrf.mxu0
    %v439 = vadd.f32 %v355, %v438
    %v440 = vpop.f32.mrf.mxu0
    %441 = vdwg.mxu0
    %v442 = vld [vmem:[#allocation8] sm:$0xff]
    %v443 = vld [vmem:[#allocation8 + $0x8] sm:$0xff]
    %v444 = vld [vmem:[#allocation8 + $0x10] sm:$0xff]
    %v445 = vld [vmem:[#allocation8 + $0x18] sm:$0xff]
    %v446 = vld [vmem:[#allocation8 + $0x20] sm:$0xff]
    %v447 = vld [vmem:[#allocation8 + $0x28] sm:$0xff]
    %v448 = vld [vmem:[#allocation8 + $0x30] sm:$0xff]
    %v449 = vld [vmem:[#allocation8 + $0x38] sm:$0xff]
    %v450 = vld [vmem:[%s10] sm:$0x1]
    %v452 = vlaneseq
    %v453 = vshrl.u32 %v452, 7
    %v454 = vsub.s32 0, %v453
    %v455 = vrot.slane %v450, %v454
    %457 = vmatprep.subr.mxu0 0.0
    %458 = vmatpush1.msra.mxu0 0.0
    %459 = vmatprep.subr.mxu0 0.0
    %460 = vmatpush1.msra.mxu0 0.0
    %461 = vmatprep.subr.mxu0 0.0
    %462 = vmatpush1.msra.mxu0 0.0
    %463 = vmatprep.subr.mxu0 0.0
    %464 = vmatpush1.msra.mxu0 0.0
    %465 = vmatprep.subr.mxu0 0.0
    %466 = vmatpush1.msra.mxu0 0.0
    %467 = vmatprep.subr.mxu0 0.0
    %468 = vmatpush1.msra.mxu0 0.0
    %469 = vmatprep.subr.mxu0 0.0
    %470 = vmatpush1.msra.mxu0 0.0
    %471 = vmatprep.subr.mxu0 0.0
    %472 = vmatpush1.msra.mxu0 0.0
    %473 = vmatprep.subr.mxu0 0.0
    %474 = vmatpush1.msra.mxu0 %v449
    %475 = vmatprep.subr.mxu0 0.0
    %476 = vmatpush1.msra.mxu0 %v448
    %477 = vmatprep.subr.mxu0 0.0
    %478 = vmatpush1.msra.mxu0 %v447
    %479 = vmatprep.subr.mxu0 0.0
    %480 = vmatpush1.msra.mxu0 %v446
    %481 = vmatprep.subr.mxu0 0.0
    %482 = vmatpush1.msra.mxu0 %v445
    %483 = vmatprep.subr.mxu0 0.0
    %484 = vmatpush1.msra.mxu0 %v444
    %485 = vmatprep.subr.mxu0 0.0
    %486 = vmatpush1.msra.mxu0 %v443
    %487 = vmatprep.subr.mxu0 0.0
    %488 = vmatpush1.msra.mxu0 %v442
    %489 = vmatprep.subr.mxu0 0.0
    %490 = vmatpush2.msra.mxu0 0.0
    %491 = vmatprep.subr.mxu0 0.0
    %492 = vmatpush2.msra.mxu0 0.0
    %493 = vmatprep.subr.mxu0 0.0
    %494 = vmatpush2.msra.mxu0 0.0
    %495 = vmatprep.subr.mxu0 0.0
    %496 = vmatpush2.msra.mxu0 0.0
    %497 = vmatprep.subr.mxu0 0.0
    %498 = vmatpush2.msra.mxu0 0.0
    %499 = vmatprep.subr.mxu0 0.0
    %500 = vmatpush2.msra.mxu0 0.0
    %501 = vmatprep.subr.mxu0 0.0
    %502 = vmatpush2.msra.mxu0 0.0
    %503 = vmatprep.subr.mxu0 0.0
    %504 = vmatpush2.msra.mxu0 0.0
    %505 = vmatprep.subr.mxu0 0.0
    %506 = vmatpush2.msra.mxu0 0.0
    %507 = vmatprep.subr.mxu0 0.0
    %508 = vmatpush2.msra.mxu0 0.0
    %509 = vmatprep.subr.mxu0 0.0
    %510 = vmatpush2.msra.mxu0 0.0
    %511 = vmatprep.subr.mxu0 0.0
    %512 = vmatpush2.msra.mxu0 0.0
    %513 = vmatprep.subr.mxu0 0.0
    %514 = vmatpush2.msra.mxu0 0.0
    %515 = vmatprep.subr.mxu0 0.0
    %516 = vmatpush2.msra.mxu0 0.0
    %517 = vmatprep.subr.mxu0 0.0
    %518 = vmatpush2.msra.mxu0 0.0
    %519 = vmatprep.subr.mxu0 0.0
    %520 = vmatpush2.msra.mxu0 0.0
    %521 = vmatprep.mubr.f32.mxu0 0.0
    %522 = vmatmul.mubr.f32.gmra.mxu0 %v134
    %v523 = vpop.f32.mrf.mxu0
    %v524 = vadd.f32 %v455, %v523
    %v525 = vpop.f32.mrf.mxu0
    %526 = vmatprep.mubr.f32.mxu0 0.0
    %527 = vmatmul.mubr.f32.gmra.mxu0 %v137
    %v528 = vpop.f32.mrf.mxu0
    %v529 = vadd.f32 %v455, %v528
    %v530 = vpop.f32.mrf.mxu0
    %531 = vmatprep.mubr.f32.mxu0 0.0
    %532 = vmatmul.mubr.f32.gmra.mxu0 %v140
    %v533 = vpop.f32.mrf.mxu0
    %v534 = vadd.f32 %v455, %v533
    %v535 = vpop.f32.mrf.mxu0
    %536 = vmatprep.mubr.f32.mxu0 0.0
    %537 = vmatmul.mubr.f32.gmra.mxu0 %v143
    %v538 = vpop.f32.mrf.mxu0
    %v539 = vadd.f32 %v455, %v538
    %v540 = vpop.f32.mrf.mxu0
    %541 = vdwg.mxu0
    %v542 = vld [vmem:[%s1] sm:$0xff]
    %v543 = vld [vmem:[%s1 + $0x8] sm:$0xff]
    %v544 = vld [vmem:[%s1 + $0x10] sm:$0xff]
    %v545 = vld [vmem:[%s1 + $0x18] sm:$0xff]
    %v546 = vld [vmem:[%s2] sm:$0xff]
    %v547 = vld [vmem:[%s2 + $0x8] sm:$0xff]
    %v548 = vld [vmem:[%s2 + $0x10] sm:$0xff]
    %v549 = vld [vmem:[%s2 + $0x18] sm:$0xff]
    %551 = vset.pattern.permute.xlu0 0
    %552 = vperm.xlu0 %551, %v542
    %v553 = vpop.permute.xlu0 %552
    %556 = vset.pattern.permute.xlu0 0
    %557 = vperm.xlu0 %556, %v543
    %v558 = vpop.permute.xlu0 %557
    %561 = vset.pattern.permute.xlu0 0
    %562 = vperm.xlu0 %561, %v544
    %v563 = vpop.permute.xlu0 %562
    %566 = vset.pattern.permute.xlu0 0
    %567 = vperm.xlu0 %566, %v545
    %v568 = vpop.permute.xlu0 %567
    %v570 = vmul.f32 %v553, %v324
    %v571 = vmul.f32 %v558, %v329
    %v572 = vmul.f32 %v563, %v334
    %v573 = vmul.f32 %v568, %v339
    %574 = vset.pattern.permute.xlu0 1
    %575 = vperm.xlu0 %574, %v542
    %v576 = vpop.permute.xlu0 %575
    %578 = vset.pattern.permute.xlu0 1
    %579 = vperm.xlu0 %578, %v543
    %v580 = vpop.permute.xlu0 %579
    %582 = vset.pattern.permute.xlu0 1
    %583 = vperm.xlu0 %582, %v544
    %v584 = vpop.permute.xlu0 %583
    %586 = vset.pattern.permute.xlu0 1
    %587 = vperm.xlu0 %586, %v545
    %v588 = vpop.permute.xlu0 %587
    %v590 = vmul.f32 %v576, %v424
    %v591 = vmul.f32 %v580, %v429
    %v592 = vmul.f32 %v584, %v434
    %v593 = vmul.f32 %v588, %v439
    %v594 = vadd.f32 %v570, %v590
    %v595 = vadd.f32 %v571, %v591
    %v596 = vadd.f32 %v572, %v592
    %v597 = vadd.f32 %v573, %v593
    %598 = vset.pattern.permute.xlu0 2
    %599 = vperm.xlu0 %598, %v542
    %v600 = vpop.permute.xlu0 %599
    %602 = vset.pattern.permute.xlu0 2
    %603 = vperm.xlu0 %602, %v543
    %v604 = vpop.permute.xlu0 %603
    %606 = vset.pattern.permute.xlu0 2
    %607 = vperm.xlu0 %606, %v544
    %v608 = vpop.permute.xlu0 %607
    %610 = vset.pattern.permute.xlu0 2
    %611 = vperm.xlu0 %610, %v545
    %v612 = vpop.permute.xlu0 %611
    %v614 = vmul.f32 %v600, %v524
    %v615 = vmul.f32 %v604, %v529
    %v616 = vmul.f32 %v608, %v534
    %v617 = vmul.f32 %v612, %v539
    %v618 = vadd.f32 %v594, %v614
    %v619 = vadd.f32 %v595, %v615
    %v620 = vadd.f32 %v596, %v616
    %v621 = vadd.f32 %v597, %v617
    %623 = vset.pattern.permute.xlu0 0
    %624 = vperm.xlu0 %623, %v546
    %v625 = vpop.permute.xlu0 %624
    %628 = vset.pattern.permute.xlu0 0
    %629 = vperm.xlu0 %628, %v547
    %v630 = vpop.permute.xlu0 %629
    %633 = vset.pattern.permute.xlu0 0
    %634 = vperm.xlu0 %633, %v548
    %v635 = vpop.permute.xlu0 %634
    %638 = vset.pattern.permute.xlu0 0
    %639 = vperm.xlu0 %638, %v549
    %v640 = vpop.permute.xlu0 %639
    %v642 = vadd.f32 %v618, %v625
    %v643 = vadd.f32 %v619, %v630
    %v644 = vadd.f32 %v620, %v635
    %v645 = vadd.f32 %v621, %v640
    %646 = vst.msk [vmem:[#allocation11] sm:$0xff] %vm132, %v642
    %647 = vst.msk [vmem:[#allocation11 + $0x8] sm:$0xff] %vm132, %v643
    %648 = vst.msk [vmem:[#allocation11 + $0x10] sm:$0xff] %vm132, %v644
    %649 = vst.msk [vmem:[#allocation11 + $0x18] sm:$0xff] %vm132, %v645
    %650 = vset.pattern.permute.xlu0 3
    %651 = vperm.xlu0 %650, %v542
    %v652 = vpop.permute.xlu0 %651
    %654 = vset.pattern.permute.xlu0 3
    %655 = vperm.xlu0 %654, %v543
    %v656 = vpop.permute.xlu0 %655
    %658 = vset.pattern.permute.xlu0 3
    %659 = vperm.xlu0 %658, %v544
    %v660 = vpop.permute.xlu0 %659
    %662 = vset.pattern.permute.xlu0 3
    %663 = vperm.xlu0 %662, %v545
    %v664 = vpop.permute.xlu0 %663
    %v666 = vmul.f32 %v652, %v324
    %v667 = vmul.f32 %v656, %v329
    %v668 = vmul.f32 %v660, %v334
    %v669 = vmul.f32 %v664, %v339
    %670 = vset.pattern.permute.xlu0 4
    %671 = vperm.xlu0 %670, %v542
    %v672 = vpop.permute.xlu0 %671
    %674 = vset.pattern.permute.xlu0 4
    %675 = vperm.xlu0 %674, %v543
    %v676 = vpop.permute.xlu0 %675
    %678 = vset.pattern.permute.xlu0 4
    %679 = vperm.xlu0 %678, %v544
    %v680 = vpop.permute.xlu0 %679
    %682 = vset.pattern.permute.xlu0 4
    %683 = vperm.xlu0 %682, %v545
    %v684 = vpop.permute.xlu0 %683
    %v686 = vmul.f32 %v672, %v424
    %v687 = vmul.f32 %v676, %v429
    %v688 = vmul.f32 %v680, %v434
    %v689 = vmul.f32 %v684, %v439
    %v690 = vadd.f32 %v666, %v686
    %v691 = vadd.f32 %v667, %v687
    %v692 = vadd.f32 %v668, %v688
    %v693 = vadd.f32 %v669, %v689
    %694 = vset.pattern.permute.xlu0 5
    %695 = vperm.xlu0 %694, %v542
    %v696 = vpop.permute.xlu0 %695
    %698 = vset.pattern.permute.xlu0 5
    %699 = vperm.xlu0 %698, %v543
    %v700 = vpop.permute.xlu0 %699
    %702 = vset.pattern.permute.xlu0 5
    %703 = vperm.xlu0 %702, %v544
    %v704 = vpop.permute.xlu0 %703
    %706 = vset.pattern.permute.xlu0 5
    %707 = vperm.xlu0 %706, %v545
    %v708 = vpop.permute.xlu0 %707
    %v710 = vmul.f32 %v696, %v524
    %v711 = vmul.f32 %v700, %v529
    %v712 = vmul.f32 %v704, %v534
    %v713 = vmul.f32 %v708, %v539
    %v714 = vadd.f32 %v690, %v710
    %v715 = vadd.f32 %v691, %v711
    %v716 = vadd.f32 %v692, %v712
    %v717 = vadd.f32 %v693, %v713
    %718 = vset.pattern.permute.xlu0 1
    %719 = vperm.xlu0 %718, %v546
    %v720 = vpop.permute.xlu0 %719
    %722 = vset.pattern.permute.xlu0 1
    %723 = vperm.xlu0 %722, %v547
    %v724 = vpop.permute.xlu0 %723
    %726 = vset.pattern.permute.xlu0 1
    %727 = vperm.xlu0 %726, %v548
    %v728 = vpop.permute.xlu0 %727
    %730 = vset.pattern.permute.xlu0 1
    %731 = vperm.xlu0 %730, %v549
    %v732 = vpop.permute.xlu0 %731
    %v734 = vadd.f32 %v714, %v720
    %v735 = vadd.f32 %v715, %v724
    %v736 = vadd.f32 %v716, %v728
    %v737 = vadd.f32 %v717, %v732
    %738 = vst.msk [vmem:[#allocation13] sm:$0xff] %vm132, %v734
    %739 = vst.msk [vmem:[#allocation13 + $0x8] sm:$0xff] %vm132, %v735
    %740 = vst.msk [vmem:[#allocation13 + $0x10] sm:$0xff] %vm132, %v736
    %741 = vst.msk [vmem:[#allocation13 + $0x18] sm:$0xff] %vm132, %v737
    %742 = vset.pattern.permute.xlu0 6
    %743 = vperm.xlu0 %742, %v542
    %v744 = vpop.permute.xlu0 %743
    %746 = vset.pattern.permute.xlu0 6
    %747 = vperm.xlu0 %746, %v543
    %v748 = vpop.permute.xlu0 %747
    %750 = vset.pattern.permute.xlu0 6
    %751 = vperm.xlu0 %750, %v544
    %v752 = vpop.permute.xlu0 %751
    %754 = vset.pattern.permute.xlu0 6
    %755 = vperm.xlu0 %754, %v545
    %v756 = vpop.permute.xlu0 %755
    %v758 = vmul.f32 %v744, %v324
    %v759 = vmul.f32 %v748, %v329
    %v760 = vmul.f32 %v752, %v334
    %v761 = vmul.f32 %v756, %v339
    %762 = vset.pattern.permute.xlu0 7
    %763 = vperm.xlu0 %762, %v542
    %v764 = vpop.permute.xlu0 %763
    %766 = vset.pattern.permute.xlu0 7
    %767 = vperm.xlu0 %766, %v543
    %v768 = vpop.permute.xlu0 %767
    %770 = vset.pattern.permute.xlu0 7
    %771 = vperm.xlu0 %770, %v544
    %v772 = vpop.permute.xlu0 %771
    %774 = vset.pattern.permute.xlu0 7
    %775 = vperm.xlu0 %774, %v545
    %v776 = vpop.permute.xlu0 %775
    %v778 = vmul.f32 %v764, %v424
    %v779 = vmul.f32 %v768, %v429
    %v780 = vmul.f32 %v772, %v434
    %v781 = vmul.f32 %v776, %v439
    %v782 = vadd.f32 %v758, %v778
    %v783 = vadd.f32 %v759, %v779
    %v784 = vadd.f32 %v760, %v780
    %v785 = vadd.f32 %v761, %v781
    %786 = vset.pattern.permute.xlu0 8
    %787 = vperm.xlu0 %786, %v542
    %v788 = vpop.permute.xlu0 %787
    %790 = vset.pattern.permute.xlu0 8
    %791 = vperm.xlu0 %790, %v543
    %v792 = vpop.permute.xlu0 %791
    %794 = vset.pattern.permute.xlu0 8
    %795 = vperm.xlu0 %794, %v544
    %v796 = vpop.permute.xlu0 %795
    %798 = vset.pattern.permute.xlu0 8
    %799 = vperm.xlu0 %798, %v545
    %v800 = vpop.permute.xlu0 %799
    %v802 = vmul.f32 %v788, %v524
    %v803 = vmul.f32 %v792, %v529
    %v804 = vmul.f32 %v796, %v534
    %v805 = vmul.f32 %v800, %v539
    %v806 = vadd.f32 %v782, %v802
    %v807 = vadd.f32 %v783, %v803
    %v808 = vadd.f32 %v784, %v804
    %v809 = vadd.f32 %v785, %v805
    %810 = vset.pattern.permute.xlu0 2
    %811 = vperm.xlu0 %810, %v546
    %v812 = vpop.permute.xlu0 %811
    %814 = vset.pattern.permute.xlu0 2
    %815 = vperm.xlu0 %814, %v547
    %v816 = vpop.permute.xlu0 %815
    %818 = vset.pattern.permute.xlu0 2
    %819 = vperm.xlu0 %818, %v548
    %v820 = vpop.permute.xlu0 %819
    %822 = vset.pattern.permute.xlu0 2
    %823 = vperm.xlu0 %822, %v549
    %v824 = vpop.permute.xlu0 %823
    %v826 = vadd.f32 %v806, %v812
    %v827 = vadd.f32 %v807, %v816
    %v828 = vadd.f32 %v808, %v820
    %v829 = vadd.f32 %v809, %v824
    %830 = vst.msk [vmem:[#allocation14] sm:$0xff] %vm132, %v826
    %831 = vst.msk [vmem:[#allocation14 + $0x8] sm:$0xff] %vm132, %v827
    %832 = vst.msk [vmem:[#allocation14 + $0x10] sm:$0xff] %vm132, %v828
    %833 = vst.msk [vmem:[#allocation14 + $0x18] sm:$0xff] %vm132, %v829
    // Predicated region
    $region62: #{tpu_custom_call.1} parent=1 // pred_check
      _
    $region63: #{tpu_custom_call.1} parent=1 // pred_check_branch
      %835 = sbr.rel (0) target = $region65
    $region64: #{tpu_custom_call.1} parent=1 // pred_region
      %s837 = ssub.s32 1024, 1024
      %838 = vsyncadd [#allocation4], %s837
      %s839 = sshll.u32 [#allocation10], 4
      %s840 = int_to_ptr.vmem [resolvable:$true] %s839
      %845 = dma.vmem_to_hbm [thread:$0]  %s840, 1024, %s11, [#allocation4], 256, 256, 16
    $region65: #{tpu_custom_call.1} parent=1 // pred_fallthru
      _
    // Predicated region
    $region66: #{tpu_custom_call.1} parent=1 // pred_check
      _
    $region67: #{tpu_custom_call.1} parent=1 // pred_check_branch
      %847 = sbr.rel (0) target = $region69
    $region68: #{tpu_custom_call.1} parent=1 // pred_region
      %s849 = ssub.s32 512, 512
      %850 = vsyncadd [#allocation12], %s849
      %s851 = sshll.u32 [#allocation11], 4
      %s852 = int_to_ptr.vmem [resolvable:$true] %s851
      %857 = dma.vmem_to_hbm [thread:$0]  %s852, 512, %s12, [#allocation12], 128, 128, 8
    $region69: #{tpu_custom_call.1} parent=1 // pred_fallthru
      _
    // Predicated region
    $region70: #{tpu_custom_call.1} parent=1 // pred_check
      _
    $region71: #{tpu_custom_call.1} parent=1 // pred_check_branch
      %859 = sbr.rel (0) target = $region73
    $region72: #{tpu_custom_call.1} parent=1 // pred_region
      %s861 = ssub.s32 512, 512
      %862 = vsyncadd [#allocation12], %s861
      %s863 = sshll.u32 [#allocation13], 4
      %s864 = int_to_ptr.vmem [resolvable:$true] %s863
      %869 = dma.vmem_to_hbm [thread:$0]  %s864, 512, %s13, [#allocation12], 128, 128, 8
    $region73: #{tpu_custom_call.1} parent=1 // pred_fallthru
      _
    // Predicated region
    $region74: #{tpu_custom_call.1} parent=1 // pred_check
      _
    $region75: #{tpu_custom_call.1} parent=1 // pred_check_branch
      %871 = sbr.rel (0) target = $region77
    $region76: #{tpu_custom_call.1} parent=1 // pred_region
      %s873 = ssub.s32 512, 512
      %874 = vsyncadd [#allocation15], %s873
      %s875 = sshll.u32 [#allocation14], 4
      %s876 = int_to_ptr.vmem [resolvable:$true] %s875
      %881 = dma.vmem_to_hbm [thread:$0]  %s876, 512, %s14, [#allocation15], 128, 128, 8
    $region77: #{tpu_custom_call.1} parent=1 // pred_fallthru
      _
    // Predicated region
    $region78: #{tpu_custom_call.1} parent=1 // pred_check
      _
    $region79: #{tpu_custom_call.1} parent=1 // pred_check_branch
      %883 = sbr.rel (0) target = $region81
    $region80: #{tpu_custom_call.1} parent=1 // pred_region
      %884 = dma.done [#allocation4], 1024
    $region81: #{tpu_custom_call.1} parent=1 // pred_fallthru
      _
    // Predicated region
    $region82: #{tpu_custom_call.1} parent=1 // pred_check
      _
    $region83: #{tpu_custom_call.1} parent=1 // pred_check_branch
      %886 = sbr.rel (0) target = $region85
    $region84: #{tpu_custom_call.1} parent=1 // pred_region
      %887 = dma.done [#allocation12], 512
    $region85: #{tpu_custom_call.1} parent=1 // pred_fallthru
      _
    // Predicated region
    $region86: #{tpu_custom_call.1} parent=1 // pred_check
      _
    $region87: #{tpu_custom_call.1} parent=1 // pred_check_branch
      %889 = sbr.rel (0) target = $region89
    $region88: #{tpu_custom_call.1} parent=1 // pred_region
      %890 = dma.done [#allocation12], 512
    $region89: #{tpu_custom_call.1} parent=1 // pred_fallthru
      _
    // Predicated region
    $region90: #{tpu_custom_call.1} parent=1 // pred_check
      _
    $region91: #{tpu_custom_call.1} parent=1 // pred_check_branch
      %892 = sbr.rel (0) target = $region93
    $region92: #{tpu_custom_call.1} parent=1 // pred_region
      %893 = dma.done [#allocation15], 512
    $region93: #{tpu_custom_call.1} parent=1 // pred_fallthru
      _
    %894 = vsyncpa [#allocation3], 1
    %895 = vsyncpa [#allocation6], 1
    %896 = vsyncpa [#allocation9], 1
    %897 = vsyncpa [#allocation4], 1
    %898 = vsyncpa [#allocation12], 1
    %899 = vsyncpa [#allocation15], 1

</llo_original>
